<compile_context>
chip_gen: v7x
topology: tpu7x:2x2x1
jax: 0.10.0
libtpu: 0.0.40
codegen_flags: <defaults>
</compile_context>

<pallas_src>
import jax
import jax.numpy as jnp
from jax.experimental import pallas as pl
from jax.experimental.pallas import tpu as pltpu


def _round_up(x, m):
    return ((x + m - 1) // m) * m


def _device_kind():
    try:
        return jax.devices()[0].device_kind.lower()
    except Exception:
        return ""


def _linear_kernel(x_ref, w_ref, b_ref, o_ref):
    # x_ref: (TM, K)      streamed activation tile (bf16 or f32)
    # w_ref: (K, N_out)   VMEM-resident weight (constant block, single buffer)
    # b_ref: (1, N_out)   VMEM-resident bias (f32)
    # o_ref: (TM, N_out)  f32 logits tile
    acc = jnp.dot(x_ref[...], w_ref[...], preferred_element_type=jnp.float32)
    o_ref[...] = (acc + b_ref[...]).astype(o_ref.dtype)


def make_ctc_predictor(weight, bias, *, stream_dtype=jnp.bfloat16, tm_max=8192):
    """Build the eval-mode forward of CTCPredictor: logits = Linear(x).

    The weight transpose / zero-pad / dtype cast is done ONCE here and cached
    in the returned closure (avoids a per-call HBM pass over the weight).

    weight: (class_num, in_channels)  -- torch.nn.Linear layout
    bias:   (class_num,)
    The returned forward maps (B, T, in_channels) -> (B, T, class_num) f32.
    """
    N, K = weight.shape
    kind = _device_kind()
    is_v5 = "v5" in kind

    # Per-generation VMEM budget (scoped default: 16 MiB on v5e, 32 MiB on
    # v6e/v7x).  The limit passed to the compiler gets a little headroom.
    vmem_budget = (14 if is_v5 else 26) * 1024 * 1024
    vmem_limit = vmem_budget + 4 * 1024 * 1024

    # Lane padding of the class dim: only when it is cheap (already a multiple
    # of 128 / N >= 128) or on v5e where masked partial stores are costlier.
    if N % 128 == 0:
        n_out = N
    elif N >= 128 or is_v5:
        n_out = _round_up(N, 128)
    else:
        n_out = N

    # One-time weight transpose + zero-pad + cast: (N, K) -> (K, n_out).
    w_kn = (
        jnp.zeros((K, n_out), dtype=stream_dtype)
        .at[:, :N]
        .set(weight.T.astype(stream_dtype))
    )
    b_row = (
        jnp.zeros((1, n_out), dtype=jnp.float32)
        .at[0, :N]
        .set(bias.astype(jnp.float32))
    )

    x_bytes = jnp.dtype(stream_dtype).itemsize
    out_bytes = 4  # f32 logits
    # Resident weight/bias are single-buffered (Buffered(1), constant block).
    resident_bytes = K * n_out * x_bytes + n_out * 4
    # Streamed tiles are double-buffered by the Pallas pipeline.
    stream_bytes_per_row = (K * x_bytes + n_out * out_bytes) * 2
    avail = int(0.85 * vmem_budget) - resident_bytes
    # TODO(synk): if the resident weight alone blows the VMEM budget (very
    # large in_channels * class_num), tile the class dim with an extra
    # "parallel" N grid axis instead of shrinking TM.
    tm_budget = max(8, (max(avail, 0) // stream_bytes_per_row) // 8 * 8)

    def forward(x):
        B, T, Kx = x.shape
        assert Kx == K, "in_channels mismatch"
        M = B * T

        TM = min(tm_max, tm_budget)
        if M <= TM:
            if M >= 1024:
                # Guarantee >= 2 grid blocks so a dual-TensorCore chip (v7x)
                # can shard the "parallel" M axis; harmless on v5e/v6e.
                TM = _round_up(pl.cdiv(M, 2), 8)
            else:
                TM = _round_up(M, 8)

        grid = (pl.cdiv(M, TM),)

        x2d = x.reshape(M, K).astype(stream_dtype)

        cost = pl.CostEstimate(
            flops=2 * M * K * n_out,
            bytes_accessed=(M * K * x_bytes + K * n_out * x_bytes
                            + n_out * 4 + M * n_out * out_bytes),
            transcendentals=0,
        )

        out2d = pl.pallas_call(
            _linear_kernel,
            out_shape=jax.ShapeDtypeStruct((M, n_out), jnp.float32),
            grid=grid,
            in_specs=[
                # Streamed activations (double-buffered by default).
                pl.BlockSpec((TM, K), lambda i: (i, 0)),
                # VMEM-resident weight/bias: constant index_map, one buffer.
                pl.BlockSpec((K, n_out), lambda i: (0, 0),
                             pipeline_mode=pl.Buffered(1)),
                pl.BlockSpec((1, n_out), lambda i: (0, 0),
                             pipeline_mode=pl.Buffered(1)),
            ],
            out_specs=pl.BlockSpec((TM, n_out), lambda i: (i, 0)),
            compiler_params=pltpu.CompilerParams(
                dimension_semantics=("parallel",),
                vmem_limit_bytes=vmem_limit,
            ),
            cost_estimate=cost,
        )(x2d, w_kn, b_row)

        if n_out != N:
            out2d = out2d[:, :N]
        return out2d.reshape(B, T, N)

    return forward


if __name__ == "__main__":
    # Small, deterministic shapes consistent with the module:
    #   batch=2, seq=8, in_channels=32, class_num=16
    B, T, IN_CHANNELS, CLASS_NUM = 2, 8, 32, 16

    key = jax.random.PRNGKey(0)
    kx, kw, kb = jax.random.split(key, 3)

    x = jax.random.normal(kx, (B, T, IN_CHANNELS), dtype=jnp.float32)

    # Deterministic parameter init mirroring torch.nn.Linear's default
    # uniform(-1/sqrt(in_channels), 1/sqrt(in_channels)).
    bound = 1.0 / (IN_CHANNELS ** 0.5)
    weight = jax.random.uniform(
        kw, (CLASS_NUM, IN_CHANNELS), dtype=jnp.float32, minval=-bound, maxval=bound
    )
    bias = jax.random.uniform(
        kb, (CLASS_NUM,), dtype=jnp.float32, minval=-bound, maxval=bound
    )

    forward = make_ctc_predictor(weight, bias)   # params prepared once
    out = forward(x)
    out = jax.block_until_ready(out)

    # Reference with the same bf16 streaming / f32 accumulation as the kernel.
    x_s = x.astype(jnp.bfloat16).reshape(-1, IN_CHANNELS)
    w_s = weight.astype(jnp.bfloat16)
    ref = (
        jnp.dot(x_s, w_s.T, preferred_element_type=jnp.float32).reshape(
            B, T, CLASS_NUM
        )
        + bias
    )

    assert out.shape == (B, T, CLASS_NUM)
    assert out.dtype == jnp.float32
    assert jnp.allclose(out, ref, atol=1e-3, rtol=1e-3)

    print("KERNEL_OK")
</pallas_src>

<mosaic_0001>
module attributes {stable_mosaic.version = 11 : i64} {
  func.func @_linear_kernel(%arg0: i32, %arg1: memref<16x32xbf16, #tpu.memory_space<vmem>>, %arg2: memref<32x16xbf16, #tpu.memory_space<vmem>>, %arg3: memref<1x16xf32, #tpu.memory_space<vmem>>, %arg4: memref<16x16xf32, #tpu.memory_space<vmem>>) attributes {dimension_semantics = [#tpu.dimension_semantics<parallel>], iteration_bounds = array<i64: 1>, scalar_prefetch = 0 : i64, scratch_operands = 0 : i64, tpu.core_type = #tpu.core_type<tc>, window_params = [{transform_indices = @transform_0, window_bounds = array<i64: 16, 32>}, {pipeline_mode = #tpu.pipeline_mode<synchronous>, transform_indices = @transform_1, window_bounds = array<i64: 32, 16>}, {pipeline_mode = #tpu.pipeline_mode<synchronous>, transform_indices = @transform_2, window_bounds = array<i64: 1, 16>}, {transform_indices = @transform_3, window_bounds = array<i64: 16, 16>}]} {
    %c0 = arith.constant 0 : index
    %c0_0 = arith.constant 0 : index
    %0 = vector.load %arg1[%c0, %c0_0] : memref<16x32xbf16, #tpu.memory_space<vmem>>, vector<16x32xbf16>
    %c0_1 = arith.constant 0 : index
    %c0_2 = arith.constant 0 : index
    %1 = vector.load %arg2[%c0_1, %c0_2] : memref<32x16xbf16, #tpu.memory_space<vmem>>, vector<32x16xbf16>
    %cst = arith.constant dense<0.000000e+00> : vector<16x16xf32>
    %2 = tpu.matmul %0, %1, %cst {dimension_numbers = #tpu.dot_dimension_numbers<[1], [0], [0], [1], [0, 0, 1, 1], [], []>} : vector<16x32xbf16>, vector<32x16xbf16>, vector<16x16xf32> -> vector<16x16xf32>
    %c0_3 = arith.constant 0 : index
    %c0_4 = arith.constant 0 : index
    %3 = vector.load %arg3[%c0_3, %c0_4] : memref<1x16xf32, #tpu.memory_space<vmem>>, vector<1x16xf32>
    %4 = vector.broadcast %3 : vector<1x16xf32> to vector<16x16xf32>
    %5 = arith.addf %2, %4 : vector<16x16xf32>
    %c0_5 = arith.constant 0 : index
    %c0_6 = arith.constant 0 : index
    %6 = vector.load %arg4[%c0_5, %c0_6] : memref<16x16xf32, #tpu.memory_space<vmem>>, vector<16x16xf32>
    tpu.vector_store %arg4[%c0_5, %c0_6], %5 {strides = array<i32>} : memref<16x16xf32, #tpu.memory_space<vmem>>, vector<16x16xf32>,
    return
  }
  func.func @transform_0(%arg0: i32) -> (i32, i32) {
    %c0_i32 = arith.constant 0 : i32
    %c0_i32_0 = arith.constant 0 : i32
    return %arg0, %c0_i32 : i32, i32
  }
  func.func @transform_1(%arg0: i32) -> (i32, i32) {
    %c0_i32 = arith.constant 0 : i32
    %c0_i32_0 = arith.constant 0 : i32
    %c0_i32_1 = arith.constant 0 : i32
    return %c0_i32, %c0_i32_0 : i32, i32
  }
  func.func @transform_2(%arg0: i32) -> (i32, i32) {
    %c0_i32 = arith.constant 0 : i32
    %c0_i32_0 = arith.constant 0 : i32
    %c0_i32_1 = arith.constant 0 : i32
    return %c0_i32, %c0_i32_0 : i32, i32
  }
  func.func @transform_3(%arg0: i32) -> (i32, i32) {
    %c0_i32 = arith.constant 0 : i32
    %c0_i32_0 = arith.constant 0 : i32
    return %arg0, %c0_i32 : i32, i32
  }
}

</mosaic_0001>

<llo_original>
// kernel: tpu_custom_call.1
$region0: #{tpu_custom_call.1}
  #allocation0 [shape = 'u32[]', space=smem, size = 0x4, offset = 0x4, fixed_abs, tag = 'smem constant byte address 0x4 - core index']
  #allocation1 [shape = 'u32[144,128]{1,0:T(1,128)}', space=vmem, size = 0x12000, scoped, tag = 'internal scratch']
  %s0 = inlined_call_operand.vmem [shape: bf16[16,32], index: 0, kind: input, shape index: {}]
  %s1 = inlined_call_operand.vmem [shape: bf16[32,16], index: 1, kind: input, shape index: {}]
  %s2 = inlined_call_operand.vmem [shape: f32[1,16], index: 2, kind: input, shape index: {}]
  %s3 = inlined_call_operand.hbm [shape: f32[16,16], index: 3, kind: output, shape index: {}]
  %s4 = sld [smem:[#allocation0]]
  $region22: #{tpu_custom_call.1} parent=0
    _
  %s6 = ssub.s32 1, %s4
  %s7 = scalar_select 0, %s6, %s4
  $region1: #{tpu_custom_call.1} parent=0
    #allocation2 [shape = 'u8[8192]{0}', space=vmem, size = 0x2000, scoped, tag = 'output window, operand 0, single buffered']
    #allocation3 [shape = 's32[1]{0}', space=sflag, size = 0x4, scoped, tag = 'scoped memory for tpu_custom_call.1']
    %8 = vsyncpa [#allocation3], 0
    // Predicated region
    $region2: #{tpu_custom_call.1} parent=1 // pred_check
      _
    $region3: #{tpu_custom_call.1} parent=1 // pred_check_branch
      %10 = sbr.rel (0) target = $region5
    $region4: #{tpu_custom_call.1} parent=1 // pred_region
      _
    $region5: #{tpu_custom_call.1} parent=1 // pred_fallthru
      _
    // Predicated region
    $region6: #{tpu_custom_call.1} parent=1 // pred_check
      _
    $region7: #{tpu_custom_call.1} parent=1 // pred_check_branch
      %12 = sbr.rel (0) target = $region9
    $region8: #{tpu_custom_call.1} parent=1 // pred_region
      _
    $region9: #{tpu_custom_call.1} parent=1 // pred_fallthru
      _
    // Predicated region
    $region10: #{tpu_custom_call.1} parent=1 // pred_check
      _
    $region11: #{tpu_custom_call.1} parent=1 // pred_check_branch
      %14 = sbr.rel (0) target = $region13
    $region12: #{tpu_custom_call.1} parent=1 // pred_region
      _
    $region13: #{tpu_custom_call.1} parent=1 // pred_fallthru
      _
    %v16 = vld [vmem:[%s0] sm:$0xf]
    %v17 = vld [vmem:[%s0 + $0x4] sm:$0xf]
    %v18 = vld [vmem:[%s1] sm:$0xf]
    %v19 = vld [vmem:[%s1 + $0x4] sm:$0xf]
    %v20 = vld [vmem:[%s1 + $0x8] sm:$0xf]
    %v21 = vld [vmem:[%s1 + $0xc] sm:$0xf]
    %v22 = vld [vmem:[%s2] sm:$0x1]
    %v24 = vlaneseq
    %v25 = vshrl.u32 %v24, 7
    %v26 = vsub.s32 0, %v25
    %v27 = vrot.slane %v22, %v26
    %v31 = vunpack.c.l.b16 %v16
    %v32 = vunpack.c.l.b16 %v17
    %v33 = vpack.c.b16 %v32, %v31
    %v38 = vunpack.c.l.b16 %v18
    %v39 = vunpack.c.l.b16 %v19
    %v40 = vunpack.c.l.b16 %v20
    %v41 = vunpack.c.l.b16 %v21
    %v42 = vpack.c.b16 %v39, %v38
    %v43 = vpack.c.b16 %v41, %v40
    %vm46 = vcmask 261120
    %v48 = vsel %vm46, %v33, 0
    %50 = vmatprep.subr.bf16.mxu0 0
    %51 = vmatpush1.bf16.msra.mxu0 %v42
    %52 = vmatprep.subr.bf16.mxu0 0
    %53 = vmatpush1.bf16.msra.mxu0 %v43
    %54 = vmatprep.subr.bf16.mxu0 0
    %55 = vmatpush1.bf16.msra.mxu0 0
    %56 = vmatprep.subr.bf16.mxu0 0
    %57 = vmatpush1.bf16.msra.mxu0 0
    %58 = vmatprep.subr.bf16.mxu0 0
    %59 = vmatpush1.bf16.msra.mxu0 0
    %60 = vmatprep.subr.bf16.mxu0 0
    %61 = vmatpush1.bf16.msra.mxu0 0
    %62 = vmatprep.subr.bf16.mxu0 0
    %63 = vmatpush1.bf16.msra.mxu0 0
    %64 = vmatprep.subr.bf16.mxu0 0
    %65 = vmatpush1.bf16.msra.mxu0 0
    %66 = vmatprep.subr.bf16.mxu0 0
    %67 = vmatpush1.bf16.msra.mxu0 0
    %68 = vmatprep.subr.bf16.mxu0 0
    %69 = vmatpush1.bf16.msra.mxu0 0
    %70 = vmatprep.subr.bf16.mxu0 0
    %71 = vmatpush1.bf16.msra.mxu0 0
    %72 = vmatprep.subr.bf16.mxu0 0
    %73 = vmatpush1.bf16.msra.mxu0 0
    %74 = vmatprep.subr.bf16.mxu0 0
    %75 = vmatpush1.bf16.msra.mxu0 0
    %76 = vmatprep.subr.bf16.mxu0 0
    %77 = vmatpush1.bf16.msra.mxu0 0
    %78 = vmatprep.subr.bf16.mxu0 0
    %79 = vmatpush1.bf16.msra.mxu0 0
    %80 = vmatprep.subr.bf16.mxu0 0
    %81 = vmatpush1.bf16.msra.mxu0 0
    %82 = vmatprep.mubr.bf16.mxu0 0
    %83 = vmatmul.mubr.bf16.gmra.mrb[0].mxu0 %v48
    %v84 = vpop.f32.mrb[0].mxu0
    %v85 = vadd.f32 %v27, %v84
    %v86 = vpop.f32.mrb[0].mxu0
    %v87 = vpop.f32.mrb[0].mxu0
    %v88 = vadd.f32 %v27, %v87
    %v89 = vpop.f32.mrb[0].mxu0
    %90 = vdwg.mxu0
    %vm91 = vcmask 130048
    %92 = vst.msk [vmem:[#allocation2] sm:$0xff] %vm91, %v85
    %93 = vst.msk [vmem:[#allocation2 + $0x8] sm:$0xff] %vm91, %v88
    // Predicated region
    $region14: #{tpu_custom_call.1} parent=1 // pred_check
      _
    $region15: #{tpu_custom_call.1} parent=1 // pred_check_branch
      %95 = sbr.rel (0) target = $region17
    $region16: #{tpu_custom_call.1} parent=1 // pred_region
      %s97 = ssub.s32 256, 256
      %98 = vsyncadd [#allocation3], %s97
      %s99 = sshll.u32 [#allocation2], 4
      %s100 = int_to_ptr.vmem [resolvable:$true] %s99
      %105 = dma.vmem_to_hbm [thread:$0]  %s100, 256, %s3, [#allocation3], 128, 128, 8
    $region17: #{tpu_custom_call.1} parent=1 // pred_fallthru
      _
    // Predicated region
    $region18: #{tpu_custom_call.1} parent=1 // pred_check
      _
    $region19: #{tpu_custom_call.1} parent=1 // pred_check_branch
      %107 = sbr.rel (0) target = $region21
    $region20: #{tpu_custom_call.1} parent=1 // pred_region
      %108 = dma.done [#allocation3], 256
    $region21: #{tpu_custom_call.1} parent=1 // pred_fallthru
      _
    %109 = vsyncpa [#allocation3], 1

</llo_original>
